<compile_context>
chip_gen: v5e
topology: v5e:2x2
jax: 0.10.0
libtpu: 0.0.40
codegen_flags: <defaults>
</compile_context>

<pallas_src>
import functools
import math

import jax
import jax.numpy as jnp
from jax.experimental import pallas as pl
from jax.experimental.pallas import tpu as pltpu

COMPUTE_DTYPE = jnp.bfloat16      # MXU operand dtype (accumulation is f32)
FREQ_DIM = 256
VMEM_LIMIT_BYTES = 56 * 1024 * 1024   # safe on v5e/v6e (128 MiB) and v7x (64 MiB)


def _num_tensorcores():
    """Best-effort TensorCore count per chip visible to Pallas (2 on v7x)."""
    try:
        kind = jax.devices()[0].device_kind.lower()
    except Exception:
        return 1
    return 2 if "v7" in kind else 1


def _default_batch_tile(B):
    # v7x: one batch tile per TensorCore (nb = 2), grow batch_tile, not nb.
    # v5e/v6e: keep nb = 1 so per-depth weights are streamed from HBM once.
    # At production sizes pick batch_tile so batch_tile*T >= ~512 (v5e) /
    # ~1024 per core (v6e/v7x) to stay above the weight-streaming roofline.
    if _num_tensorcores() >= 2 and B % 2 == 0:
        return B // 2
    return B


# ----------------------------------------------------------------------------
# Tiled linear kernel: (M, K) @ (K, N) + b  (used for the gene embedder)
# ----------------------------------------------------------------------------

def _linear_kernel(x_ref, w_ref, b_ref, o_ref, acc_ref, *, activation):
    k = pl.program_id(2)

    @pl.when(k == 0)
    def _():
        acc_ref[...] = jnp.zeros_like(acc_ref)

    acc_ref[...] += jnp.dot(x_ref[...].astype(COMPUTE_DTYPE), w_ref[...],
                            preferred_element_type=jnp.float32)

    @pl.when(k == pl.num_programs(2) - 1)
    def _():
        y = acc_ref[...] + b_ref[...]
        if activation == "silu":
            y = y * jax.nn.sigmoid(y)
        o_ref[...] = y.astype(o_ref.dtype)


def pallas_linear(x, w, b, activation=None, tm=256, tn=512, tk=512):
    """x: (M, K), w: (K, N) bf16, b: (N,) f32 -> (M, N) f32."""
    M, K = x.shape
    _, N = w.shape
    tm = min(tm, M)
    tn = min(tn, N)
    tk = min(tk, K)
    # Zero-pad K so the reduction axis pipelines in tk-sized chunks instead of
    # falling back to one full-K (potentially tens-of-MB, un-pipelined) block.
    # Zero padding keeps the accumulation exact.
    Kp = int(pl.cdiv(K, tk)) * tk
    if Kp != K:
        x = jnp.pad(x, ((0, 0), (0, Kp - K)))
        w = jnp.pad(w, ((0, Kp - K), (0, 0)))
    grid = (pl.cdiv(M, tm), pl.cdiv(N, tn), Kp // tk)
    cost = pl.CostEstimate(flops=2 * M * N * K, transcendentals=0,
                           bytes_accessed=M * Kp * x.dtype.itemsize
                           + Kp * N * 2 + M * N * 4)
    return pl.pallas_call(
        functools.partial(_linear_kernel, activation=activation),
        out_shape=jax.ShapeDtypeStruct((M, N), jnp.float32),
        grid=grid,
        in_specs=[
            pl.BlockSpec((tm, tk), lambda i, j, k: (i, k)),
            pl.BlockSpec((tk, tn), lambda i, j, k: (k, j)),
            pl.BlockSpec((1, tn), lambda i, j, k: (0, j)),
        ],
        out_specs=pl.BlockSpec((tm, tn), lambda i, j, k: (i, j)),
        scratch_shapes=[pltpu.VMEM((tm, tn), jnp.float32)],
        compiler_params=pltpu.CompilerParams(
            dimension_semantics=("parallel", "parallel", "arbitrary")),
        cost_estimate=cost,
    )(x, w, b.reshape(1, N))


# ----------------------------------------------------------------------------
# Fused transformer stack (all depth blocks in one pallas_call)
# ----------------------------------------------------------------------------

def _layernorm(v, eps=1e-6):
    mu = jnp.mean(v, axis=-1, keepdims=True)
    var = jnp.mean((v - mu) ** 2, axis=-1, keepdims=True)
    return (v - mu) * jax.lax.rsqrt(var + eps)


def _blocks_kernel(x_ref, mod_ref, wqkv_ref, bqkv_ref, wproj_ref, bproj_ref,
                   w1_ref, b1_ref, w2_ref, b2_ref, o_ref, *, num_heads):
    d = pl.program_id(1)

    # Residual stream lives in the output VMEM block; the same block index is
    # used for every depth step, so activations stay resident across depth.
    @pl.when(d == 0)
    def _():
        o_ref[...] = x_ref[...]

    Bt, T, H = o_ref.shape
    M = Bt * T
    Dh = H // num_heads
    cdt = COMPUTE_DTYPE

    h = o_ref[...]                                   # (Bt, T, H) f32 residual

    # Precomputed adaLN modulation for this depth step: (6, Bt, 1, H).
    # Kept (Bt, 1, H) and broadcast implicitly — no (M, H) materialisation.
    shift_msa, scale_msa, gate_msa = mod_ref[0], mod_ref[1], mod_ref[2]
    shift_mlp, scale_mlp, gate_mlp = mod_ref[3], mod_ref[4], mod_ref[5]

    # ---- attention branch (big matmuls run on the fused Bt*T rows) --------
    hn = (_layernorm(h) * (1.0 + scale_msa) + shift_msa).reshape(M, H).astype(cdt)
    q = jnp.dot(hn, wqkv_ref[0], preferred_element_type=jnp.float32) + bqkv_ref[0]
    k = jnp.dot(hn, wqkv_ref[1], preferred_element_type=jnp.float32) + bqkv_ref[1]
    v = jnp.dot(hn, wqkv_ref[2], preferred_element_type=jnp.float32) + bqkv_ref[2]
    q = q * (1.0 / math.sqrt(Dh))                    # fold score scale into q

    # Cast to bf16 once (not per head) and slice per head below.
    qc = q.astype(cdt).reshape(Bt, T, H)
    kc = k.astype(cdt).reshape(Bt, T, H)
    vc = v.astype(cdt).reshape(Bt, T, H)
    wproj = wproj_ref[0]                             # (H, H) bf16
    bproj = bproj_ref[0]                             # (1, H) f32

    # Per-head accumulation straight through the head's slice of the proj
    # weight: no lane-axis concat, bounded live ranges in the unrolled loop.
    # TODO(synk): for num_heads >= 8 fold heads into the einsum batch dim
    # ((Bt*num_heads, T, Dh)) to cut MXU push/drain overhead on v5e/v6e.
    attn = jnp.zeros((M, H), jnp.float32)
    for hh in range(num_heads):
        sl = slice(hh * Dh, (hh + 1) * Dh)
        s = jnp.einsum('bqd,bkd->bqk', qc[:, :, sl], kc[:, :, sl],
                       preferred_element_type=jnp.float32)
        s = s - jnp.max(s, axis=-1, keepdims=True)
        e = jnp.exp(s)
        p = e * pl.reciprocal(jnp.sum(e, axis=-1, keepdims=True), approx=True)
        oh = jnp.einsum('bqk,bkd->bqd', p.astype(cdt), vc[:, :, sl],
                        preferred_element_type=jnp.float32)
        attn = attn + jnp.dot(oh.reshape(M, Dh).astype(cdt), wproj[sl, :],
                              preferred_element_type=jnp.float32)
    attn = attn + bproj
    h = h + gate_msa * attn.reshape(Bt, T, H)

    # ---- MLP branch --------------------------------------------------------
    # TODO(synk): at production H on v7x (64 MiB VMEM), tile w1/w2 over Hm with
    # an inner pltpu.emit_pipeline so only an Hm-chunk is resident.
    hn2 = (_layernorm(h) * (1.0 + scale_mlp) + shift_mlp).reshape(M, H).astype(cdt)
    m1 = jnp.dot(hn2, w1_ref[0], preferred_element_type=jnp.float32) + b1_ref[0]
    # TODO(synk): on v5e consider approximate="tanh" (goes to EUP) if numerics
    # allow; exact erf kept to match torch nn.GELU().
    m1 = jax.nn.gelu(m1, approximate=False)
    m2 = jnp.dot(m1.astype(cdt), w2_ref[0], preferred_element_type=jnp.float32) + b2_ref[0]
    h = h + gate_mlp * m2.reshape(Bt, T, H)

    o_ref[...] = h


def pallas_transformer_blocks(x, mod, pk, num_heads, batch_tile=None):
    """x: (B, T, H) f32, mod: (depth*6, B, 1, H) f32 precomputed adaLN."""
    B, T, H = x.shape
    depth = pk["blk_w_proj"].shape[0]
    Hm = pk["blk_w1"].shape[-1]
    if batch_tile is None:
        batch_tile = _default_batch_tile(B)
    assert B % batch_tile == 0
    nb = B // batch_tile
    # NOTE: T % 8 == 0 keeps the in-kernel (Bt,T,H)<->(Bt*T,H) reshapes free.

    # TODO(synk): x/mod blocks use a constant index across the depth axis —
    # mark them single-buffered (pipeline_mode=pl.Buffered(1)) at production H
    # to free VMEM; left default here for toy shapes.
    return pl.pallas_call(
        functools.partial(_blocks_kernel, num_heads=num_heads),
        out_shape=jax.ShapeDtypeStruct((B, T, H), jnp.float32),
        grid=(nb, depth),
        in_specs=[
            pl.BlockSpec((batch_tile, T, H), lambda i, d: (i, 0, 0)),
            pl.BlockSpec((6, batch_tile, 1, H), lambda i, d: (d, i, 0, 0)),
            pl.BlockSpec((3, H, H), lambda i, d: (d, 0, 0)),
            pl.BlockSpec((3, 1, H), lambda i, d: (d, 0, 0)),
            pl.BlockSpec((1, H, H), lambda i, d: (d, 0, 0)),
            pl.BlockSpec((1, 1, H), lambda i, d: (d, 0, 0)),
            pl.BlockSpec((1, H, Hm), lambda i, d: (d, 0, 0)),
            pl.BlockSpec((1, 1, Hm), lambda i, d: (d, 0, 0)),
            pl.BlockSpec((1, Hm, H), lambda i, d: (d, 0, 0)),
            pl.BlockSpec((1, 1, H), lambda i, d: (d, 0, 0)),
        ],
        out_specs=pl.BlockSpec((batch_tile, T, H), lambda i, d: (i, 0, 0)),
        compiler_params=pltpu.CompilerParams(
            dimension_semantics=("parallel", "arbitrary"),
            vmem_limit_bytes=VMEM_LIMIT_BYTES),
    )(x, mod,
      pk["blk_w_qkv"], pk["blk_b_qkv"], pk["blk_w_proj"], pk["blk_b_proj"],
      pk["blk_w1"], pk["blk_b1"], pk["blk_w2"], pk["blk_b2"])


# ----------------------------------------------------------------------------
# Final LayerNorm + modulate + output linear, tiled over OUT = 2*num_genes
# ----------------------------------------------------------------------------

def _final_kernel(x_ref, shift_ref, scale_ref, wlin_ref, blin_ref, o_ref, hn_ref):
    j = pl.program_id(1)
    Bt, T, H = x_ref.shape
    M = Bt * T
    tout = o_ref.shape[-1]

    # LN + modulate computed once per batch tile, reused across all OUT tiles.
    @pl.when(j == 0)
    def _():
        hn = _layernorm(x_ref[...]) * (1.0 + scale_ref[...]) + shift_ref[...]
        hn_ref[...] = hn.reshape(M, H).astype(hn_ref.dtype)

    y = (jnp.dot(hn_ref[...], wlin_ref[...], preferred_element_type=jnp.float32)
         + blin_ref[...])
    o_ref[...] = y.reshape(Bt, T, tout)


def _pick_lane_tile(total, target):
    """Largest multiple of 128 <= target that divides total (or total itself)."""
    if total % 128 != 0:
        # TODO(synk): pad OUT to a multiple of 128 at production gene counts.
        return total
    t = max(128, min(target, total) // 128 * 128)
    while total % t != 0:
        t -= 128
    return t


def pallas_final_layer(x, shift, scale, w_lin, b_lin, batch_tile=None,
                       tout_target=1024):
    B, T, H = x.shape
    OUT = w_lin.shape[-1]
    if batch_tile is None:
        batch_tile = _default_batch_tile(B)
    assert B % batch_tile == 0
    nb = B // batch_tile
    tout = _pick_lane_tile(OUT, tout_target)
    return pl.pallas_call(
        _final_kernel,
        out_shape=jax.ShapeDtypeStruct((B, T, OUT), jnp.float32),
        grid=(nb, OUT // tout),
        in_specs=[
            pl.BlockSpec((batch_tile, T, H), lambda i, j: (i, 0, 0)),
            pl.BlockSpec((batch_tile, 1, H), lambda i, j: (i, 0, 0)),
            pl.BlockSpec((batch_tile, 1, H), lambda i, j: (i, 0, 0)),
            pl.BlockSpec((H, tout), lambda i, j: (0, j)),
            pl.BlockSpec((1, tout), lambda i, j: (0, j)),
        ],
        out_specs=pl.BlockSpec((batch_tile, T, tout), lambda i, j: (i, 0, j)),
        scratch_shapes=[pltpu.VMEM((batch_tile * T, H), COMPUTE_DTYPE)],
        compiler_params=pltpu.CompilerParams(
            dimension_semantics=("parallel", "arbitrary"),
            vmem_limit_bytes=VMEM_LIMIT_BYTES),
    )(x, shift, scale, w_lin, b_lin)


# ----------------------------------------------------------------------------
# Glue (embeddings, parameter setup / packing, model driver)
# ----------------------------------------------------------------------------

def timestep_embedding(t, dim, max_period=10000):
    half = dim // 2
    freqs = jnp.exp(-math.log(max_period) *
                    jnp.arange(half, dtype=jnp.float32) / half)
    args = t.astype(jnp.float32)[:, None] * freqs[None]
    return jnp.concatenate([jnp.cos(args), jnp.sin(args)], axis=-1)


def sincos_time_embed(embed_dim, length):
    pos = jnp.arange(length, dtype=jnp.float32)[:, None]
    omega = jnp.arange(embed_dim // 2, dtype=jnp.float32) / (embed_dim / 2.0)
    omega = 1.0 / (10000.0 ** omega)
    pe = pos * omega[None]
    return jnp.concatenate([jnp.sin(pe), jnp.cos(pe)], axis=1)[None]   # (1, T, H)


def init_params(key, G, T, H, depth, num_cell_types, mlp_ratio=4.0,
                learn_sigma=True):
    """Canonical f32 parameters (same layout as the torch module)."""
    out_features = 2 * G if learn_sigma else G
    Hm = int(H * mlp_ratio)
    keys = iter(jax.random.split(key, 32 + 16 * depth))

    def nrm(shape, std=0.02):
        return std * jax.random.normal(next(keys), shape, dtype=jnp.float32)

    p = {}
    p["gene_w"] = nrm((G, H))
    p["gene_b"] = nrm((H,))
    p["t_w1"] = nrm((FREQ_DIM, H))
    p["t_b1"] = nrm((H,))
    p["t_w2"] = nrm((H, H))
    p["t_b2"] = nrm((H,))
    p["cell_table"] = nrm((num_cell_types + 1, H))
    p["time_embed"] = sincos_time_embed(H, T)               # fixed sin/cos buffer
    blocks = []
    for _ in range(depth):
        blocks.append({
            "w_ada": nrm((H, 6 * H)), "b_ada": nrm((6 * H,)),
            "w_qkv": nrm((H, 3 * H)), "b_qkv": nrm((3 * H,)),
            "w_proj": nrm((H, H)), "b_proj": nrm((H,)),
            "w1": nrm((H, Hm)), "b1": nrm((Hm,)),
            "w2": nrm((Hm, H)), "b2": nrm((H,)),
        })
    p["blocks"] = blocks
    p["final_w_ada"] = nrm((H, 2 * H))
    p["final_b_ada"] = nrm((2 * H,))
    p["final_w_lin"] = nrm((H, out_features))
    p["final_b_lin"] = nrm((out_features,))
    return p


def pack_params(p):
    """Pack canonical params into the lane-aligned kernel layout."""
    def w(a):
        return a.astype(COMPUTE_DTYPE)

    blocks = p["blocks"]
    depth = len(blocks)
    H = blocks[0]["w_proj"].shape[0]
    Hm = blocks[0]["w1"].shape[1]
    OUT = p["final_w_lin"].shape[1]

    def stack(key):
        return jnp.stack([b[key] for b in blocks], axis=0)

    pk = {}
    pk["gene_w"] = w(p["gene_w"]); pk["gene_b"] = p["gene_b"]
    # Timestep-embedder weights stay f32: M = B rows -> plain XLA, no kernel.
    pk["t_w1"] = p["t_w1"]; pk["t_b1"] = p["t_b1"]
    pk["t_w2"] = p["t_w2"]; pk["t_b2"] = p["t_b2"]
    pk["cell_table"] = p["cell_table"]
    pk["time_embed"] = p["time_embed"]
    # adaLN weights stay f32 and stacked: modulation is hoisted out of the
    # depth loop and computed once per forward on the (B, H) conditioning.
    pk["blk_w_ada"] = stack("w_ada")                         # (depth, H, 6H)
    pk["blk_b_ada"] = stack("b_ada")                         # (depth, 6H)
    # qkv: (depth, H, 3H) -> (depth*3, H, H); each chunk a lane-aligned matmul.
    pk["blk_w_qkv"] = w(stack("w_qkv").reshape(depth, H, 3, H)
                        .transpose(0, 2, 1, 3).reshape(depth * 3, H, H))
    pk["blk_b_qkv"] = stack("b_qkv").reshape(depth * 3, 1, H)
    pk["blk_w_proj"] = w(stack("w_proj"))
    pk["blk_b_proj"] = stack("b_proj").reshape(depth, 1, H)
    pk["blk_w1"] = w(stack("w1")); pk["blk_b1"] = stack("b1").reshape(depth, 1, Hm)
    pk["blk_w2"] = w(stack("w2")); pk["blk_b2"] = stack("b2").reshape(depth, 1, H)
    pk["final_w_ada"] = p["final_w_ada"]                     # (H, 2H) f32
    pk["final_b_ada"] = p["final_b_ada"]                     # (2H,)   f32
    pk["final_w_lin"] = w(p["final_w_lin"])                  # (H, OUT) bf16
    pk["final_b_lin"] = p["final_b_lin"].reshape(1, OUT)
    return pk


def gene_latte_forward(pk, x, t, cell_types, num_heads, batch_tile=None):
    """x: (B, T, G), t: (B,), cell_types: (B,) -> (B, T, out_features)."""
    B, T, G = x.shape
    H = pk["gene_w"].shape[1]
    depth = pk["blk_w_proj"].shape[0]

    # gene embedder: one Pallas tiled matmul over the fused B*T rows.  bf16
    # input + full-N tile -> the big (B*T, G) activation is streamed once.
    h = pallas_linear(x.reshape(B * T, G).astype(COMPUTE_DTYPE),
                      pk["gene_w"], pk["gene_b"], tn=H)
    h = h.reshape(B, T, H) + pk["time_embed"]

    # timestep embedder (M = B rows -> plain XLA, MXU would be ~idle)
    t_freq = timestep_embedding(t, FREQ_DIM)
    te = t_freq @ pk["t_w1"] + pk["t_b1"]
    te = te * jax.nn.sigmoid(te)
    te = te @ pk["t_w2"] + pk["t_b2"]

    # cell-type embedder (eval mode: no token dropout); gather in plain JAX
    c = te + pk["cell_table"][cell_types]                    # (B, H)

    # Hoisted adaLN: SiLU(c) and every block's 6 modulation rows (plus the
    # final layer's 2) depend only on c, so compute them once here (f32).
    cs = c * jax.nn.sigmoid(c)
    mod = (jnp.einsum('bh,dhk->dbk', cs, pk["blk_w_ada"])
           + pk["blk_b_ada"][:, None, :])                    # (depth, B, 6H)
    mod = mod.reshape(depth, B, 6, H).transpose(0, 2, 1, 3)  # (depth, 6, B, H)
    mod = mod.reshape(depth * 6, B, 1, H)
    fmod = cs @ pk["final_w_ada"] + pk["final_b_ada"]        # (B, 2H)
    f_shift = fmod[:, :H].reshape(B, 1, H)
    f_scale = fmod[:, H:].reshape(B, 1, H)

    # full transformer stack: one pallas_call, activations resident across depth
    h = pallas_transformer_blocks(h, mod, pk, num_heads, batch_tile)

    # final layer, tiled over OUT
    out = pallas_final_layer(h, f_shift, f_scale,
                             pk["final_w_lin"], pk["final_b_lin"], batch_tile)
    return out


# ----------------------------------------------------------------------------
# Pure-JAX f32 reference (for correctness check)
# ----------------------------------------------------------------------------

def ref_forward(params, x, t, cell_types, num_heads):
    B, T, G = x.shape
    H = params["gene_w"].shape[1]

    def ln(v):
        mu = v.mean(-1, keepdims=True)
        var = ((v - mu) ** 2).mean(-1, keepdims=True)
        return (v - mu) / jnp.sqrt(var + 1e-6)

    h = (x.reshape(B * T, G) @ params["gene_w"] + params["gene_b"]).reshape(B, T, H)
    h = h + params["time_embed"]
    tf = timestep_embedding(t, FREQ_DIM)
    te = tf @ params["t_w1"] + params["t_b1"]
    te = te * jax.nn.sigmoid(te)
    te = te @ params["t_w2"] + params["t_b2"]
    c = te + params["cell_table"][cell_types]

    D = H // num_heads
    for blk in params["blocks"]:
        cs = c * jax.nn.sigmoid(c)
        mod = cs @ blk["w_ada"] + blk["b_ada"]
        sm, scm, gm, sp, scp, gp = jnp.split(mod, 6, axis=1)
        hn = ln(h) * (1 + scm[:, None, :]) + sm[:, None, :]
        qkv = (hn @ blk["w_qkv"] + blk["b_qkv"]).reshape(B, T, 3, num_heads, D)
        qkv = qkv.transpose(2, 0, 3, 1, 4)
        q, k, v = qkv[0], qkv[1], qkv[2]
        a = jnp.einsum('bhqd,bhkd->bhqk', q, k) / math.sqrt(D)
        a = jax.nn.softmax(a, -1)
        ao = jnp.einsum('bhqk,bhkd->bhqd', a, v).transpose(0, 2, 1, 3).reshape(B, T, H)
        ao = ao @ blk["w_proj"] + blk["b_proj"]
        h = h + gm[:, None, :] * ao
        hn2 = ln(h) * (1 + scp[:, None, :]) + sp[:, None, :]
        m = hn2 @ blk["w1"] + blk["b1"]
        m = jax.nn.gelu(m, approximate=False)
        m = m @ blk["w2"] + blk["b2"]
        h = h + gp[:, None, :] * m

    cs = c * jax.nn.sigmoid(c)
    mod = cs @ params["final_w_ada"] + params["final_b_ada"]
    shift, scale = jnp.split(mod, 2, axis=1)
    hn = ln(h) * (1 + scale[:, None, :]) + shift[:, None, :]
    return hn @ params["final_w_lin"] + params["final_b_lin"]


# ----------------------------------------------------------------------------
# Main
# ----------------------------------------------------------------------------

if __name__ == "__main__":
    B = 2                  # batch
    T = 8                  # num_timepoints (multiple of 8 keeps reshapes free)
    G = 64                 # num_genes
    H = 64                 # hidden_size
    NUM_HEADS = 4
    DEPTH = 2
    NUM_CELL_TYPES = 10
    LEARN_SIGMA = True     # out_features = 2 * G

    key = jax.random.PRNGKey(0)
    kp, kx, kt, kc = jax.random.split(key, 4)

    params = init_params(kp, G, T, H, DEPTH, NUM_CELL_TYPES,
                         mlp_ratio=4.0, learn_sigma=LEARN_SIGMA)
    pk = pack_params(params)

    x = jax.random.normal(kx, (B, T, G), dtype=jnp.float32)
    t = jax.random.randint(kt, (B,), 0, 1000).astype(jnp.float32)
    cell_types = jax.random.randint(kc, (B,), 0, NUM_CELL_TYPES)

    out = gene_latte_forward(pk, x, t, cell_types, NUM_HEADS)
    out = jax.block_until_ready(out)

    ref = ref_forward(params, x, t, cell_types, NUM_HEADS)
    assert out.shape == (B, T, 2 * G if LEARN_SIGMA else G), out.shape
    max_err = float(jnp.max(jnp.abs(out - ref)))
    # Intentional numerics delta vs the f32 reference: bf16 MXU operands and
    # pl.reciprocal(approx=True) in the softmax denominator -> 3e-2 tolerance.
    assert jnp.allclose(out, ref, atol=3e-2, rtol=3e-2), f"max_err={max_err}"

    # TODO(synk): cell-type token dropout (train-mode classifier-free guidance)
    # is host-side RNG control flow and is not implemented (eval semantics only).
    print("KERNEL_OK")
</pallas_src>

<mosaic_0001>
module attributes {stable_mosaic.version = 11 : i64} {
  func.func @_linear_kernel(%arg0: i32, %arg1: i32, %arg2: i32, %arg3: memref<16x64xbf16, #tpu.memory_space<vmem>>, %arg4: memref<64x64xbf16, #tpu.memory_space<vmem>>, %arg5: memref<1x64xf32, #tpu.memory_space<vmem>>, %arg6: memref<16x64xf32, #tpu.memory_space<vmem>>, %arg7: memref<16x64xf32, #tpu.memory_space<vmem>>) attributes {dimension_semantics = [#tpu.dimension_semantics<parallel>, #tpu.dimension_semantics<parallel>, #tpu.dimension_semantics<arbitrary>], iteration_bounds = array<i64: 1, 1, 1>, scalar_prefetch = 0 : i64, scratch_operands = 1 : i64, tpu.core_type = #tpu.core_type<tc>, window_params = [{transform_indices = @transform_0, window_bounds = array<i64: 16, 64>}, {transform_indices = @transform_1, window_bounds = array<i64: 64, 64>}, {transform_indices = @transform_2, window_bounds = array<i64: 1, 64>}, {transform_indices = @transform_3, window_bounds = array<i64: 16, 64>}]} {
    %c0_i32 = arith.constant 0 : i32
    %0 = arith.cmpi eq, %arg2, %c0_i32 : i32
    %1 = arith.extui %0 : i1 to i32
    %c0_i32_0 = arith.constant 0 : i32
    %2 = arith.cmpi ne, %1, %c0_i32_0 : i32
    scf.if %2 {
      %cst_10 = arith.constant 0.000000e+00 : f32
      %12 = vector.broadcast %cst_10 : f32 to vector<16x64xf32>
      %c0_11 = arith.constant 0 : index
      %c0_12 = arith.constant 0 : index
      %13 = vector.load %arg7[%c0_11, %c0_12] : memref<16x64xf32, #tpu.memory_space<vmem>>, vector<16x64xf32>
      tpu.vector_store %arg7[%c0_11, %c0_12], %12 {strides = array<i32>} : memref<16x64xf32, #tpu.memory_space<vmem>>, vector<16x64xf32>,
    } else {
    }
    %c0 = arith.constant 0 : index
    %c0_1 = arith.constant 0 : index
    %3 = vector.load %arg7[%c0, %c0_1] : memref<16x64xf32, #tpu.memory_space<vmem>>, vector<16x64xf32>
    %c0_2 = arith.constant 0 : index
    %c0_3 = arith.constant 0 : index
    %4 = vector.load %arg3[%c0_2, %c0_3] : memref<16x64xbf16, #tpu.memory_space<vmem>>, vector<16x64xbf16>
    %c0_4 = arith.constant 0 : index
    %c0_5 = arith.constant 0 : index
    %5 = vector.load %arg4[%c0_4, %c0_5] : memref<64x64xbf16, #tpu.memory_space<vmem>>, vector<64x64xbf16>
    %cst = arith.constant dense<0.000000e+00> : vector<16x64xf32>
    %6 = tpu.matmul %4, %5, %cst {dimension_numbers = #tpu.dot_dimension_numbers<[1], [0], [0], [1], [0, 0, 1, 1], [], []>} : vector<16x64xbf16>, vector<64x64xbf16>, vector<16x64xf32> -> vector<16x64xf32>
    %7 = arith.addf %3, %6 : vector<16x64xf32>
    %c0_6 = arith.constant 0 : index
    %c0_7 = arith.constant 0 : index
    %8 = vector.load %arg7[%c0_6, %c0_7] : memref<16x64xf32, #tpu.memory_space<vmem>>, vector<16x64xf32>
    tpu.vector_store %arg7[%c0_6, %c0_7], %7 {strides = array<i32>} : memref<16x64xf32, #tpu.memory_space<vmem>>, vector<16x64xf32>,
    %c0_i32_8 = arith.constant 0 : i32
    %9 = arith.cmpi eq, %arg2, %c0_i32_8 : i32
    %10 = arith.extui %9 : i1 to i32
    %c0_i32_9 = arith.constant 0 : i32
    %11 = arith.cmpi ne, %10, %c0_i32_9 : i32
    scf.if %11 {
      %c0_10 = arith.constant 0 : index
      %c0_11 = arith.constant 0 : index
      %12 = vector.load %arg7[%c0_10, %c0_11] : memref<16x64xf32, #tpu.memory_space<vmem>>, vector<16x64xf32>
      %c0_12 = arith.constant 0 : index
      %c0_13 = arith.constant 0 : index
      %13 = vector.load %arg5[%c0_12, %c0_13] : memref<1x64xf32, #tpu.memory_space<vmem>>, vector<1x64xf32>
      %14 = vector.broadcast %13 : vector<1x64xf32> to vector<16x64xf32>
      %15 = arith.addf %12, %14 : vector<16x64xf32>
      %c0_14 = arith.constant 0 : index
      %c0_15 = arith.constant 0 : index
      %16 = vector.load %arg6[%c0_14, %c0_15] : memref<16x64xf32, #tpu.memory_space<vmem>>, vector<16x64xf32>
      tpu.vector_store %arg6[%c0_14, %c0_15], %15 {strides = array<i32>} : memref<16x64xf32, #tpu.memory_space<vmem>>, vector<16x64xf32>,
    } else {
    }
    return
  }
  func.func @transform_0(%arg0: i32, %arg1: i32, %arg2: i32) -> (i32, i32) {
    %c0_i32 = arith.constant 0 : i32
    return %arg0, %arg2 : i32, i32
  }
  func.func @transform_1(%arg0: i32, %arg1: i32, %arg2: i32) -> (i32, i32) {
    %c0_i32 = arith.constant 0 : i32
    return %arg2, %arg1 : i32, i32
  }
  func.func @transform_2(%arg0: i32, %arg1: i32, %arg2: i32) -> (i32, i32) {
    %c0_i32 = arith.constant 0 : i32
    %c0_i32_0 = arith.constant 0 : i32
    return %c0_i32, %arg1 : i32, i32
  }
  func.func @transform_3(%arg0: i32, %arg1: i32, %arg2: i32) -> (i32, i32) {
    %c0_i32 = arith.constant 0 : i32
    return %arg0, %arg1 : i32, i32
  }
}

</mosaic_0001>

<llo_original>
// kernel: tpu_custom_call.1
$region0: #{tpu_custom_call.1}
  #allocation0 [shape = 'u32[]', space=smem, size = 0x4, offset = 0x4, fixed_abs, tag = 'smem constant byte address 0x4 - core index']
  #allocation1 [shape = 'u32[72,128]{1,0:T(1,128)}', space=vmem, size = 0x9000, scoped, tag = 'internal scratch']
  #allocation2 [shape = 'f32[16,64]{1,0:T(8,128)}', space=vmem, size = 0x2000, scoped, tag = 'scratch operand']
  %s0 = inlined_call_operand.hbm [shape: bf16[16,64], index: 0, kind: input, shape index: {}]
  %s1 = inlined_call_operand.hbm [shape: bf16[64,64], index: 1, kind: input, shape index: {}]
  %s2 = inlined_call_operand.vmem [shape: f32[1,64], index: 2, kind: input, shape index: {}]
  %s3 = inlined_call_operand.hbm [shape: f32[16,64], index: 3, kind: output, shape index: {}]
  %s4 = sld [smem:[#allocation0]]
  $region38: #{tpu_custom_call.1} parent=0
    _
  %s6 = ssub.s32 1, %s4
  %s7 = scalar_select 0, %s6, %s4
  $region1: #{tpu_custom_call.1} parent=0
    #allocation3 [shape = 'u8[4096]{0}', space=vmem, size = 0x1000, scoped, tag = 'input window, operand 0, single buffered']
    #allocation4 [shape = 's32[1]{0}', space=sflag, size = 0x4, scoped, tag = 'scoped memory for tpu_custom_call.1']
    #allocation5 [shape = 's32[1]{0}', space=sflag, size = 0x4, scoped, tag = 'scoped memory for tpu_custom_call.1']
    #allocation6 [shape = 'u8[16384]{0}', space=vmem, size = 0x4000, scoped, tag = 'input window, operand 1, single buffered']
    #allocation7 [shape = 's32[1]{0}', space=sflag, size = 0x4, scoped, tag = 'scoped memory for tpu_custom_call.1']
    #allocation8 [shape = 'u8[8192]{0}', space=vmem, size = 0x2000, scoped, tag = 'output window, operand 0, single buffered']
    %8 = vsyncpa [#allocation4], 0
    %9 = vsyncpa [#allocation7], 0
    %10 = vsyncpa [#allocation5], 0
    // Predicated region
    $region2: #{tpu_custom_call.1} parent=1 // pred_check
      _
    $region3: #{tpu_custom_call.1} parent=1 // pred_check_branch
      %12 = sbr.rel (0) target = $region5
    $region4: #{tpu_custom_call.1} parent=1 // pred_region
      %14 = vsyncadd [#allocation4], 0
      %s15 = sshll.u32 %s0, 4
      %s16 = int_to_ptr.hbm [resolvable:$true] %s15
      %s17 = sshll.u32 [#allocation3], 4
      %s18 = int_to_ptr.vmem [resolvable:$true] %s17
      %23 = dma.hbm_to_vmem [thread:$0]  %s16, 128, %s18, [#allocation4], 64, 64, 4
    $region5: #{tpu_custom_call.1} parent=1 // pred_fallthru
      _
    // Predicated region
    $region6: #{tpu_custom_call.1} parent=1 // pred_check
      _
    $region7: #{tpu_custom_call.1} parent=1 // pred_check_branch
      %25 = sbr.rel (0) target = $region9
    $region8: #{tpu_custom_call.1} parent=1 // pred_region
      %27 = vsyncadd [#allocation7], 0
      %s28 = sshll.u32 %s1, 4
      %s29 = int_to_ptr.hbm [resolvable:$true] %s28
      %s30 = sshll.u32 [#allocation6], 4
      %s31 = int_to_ptr.vmem [resolvable:$true] %s30
      %36 = dma.hbm_to_vmem [thread:$0]  %s29, 512, %s31, [#allocation7], 64, 64, 4
    $region9: #{tpu_custom_call.1} parent=1 // pred_fallthru
      _
    // Predicated region
    $region10: #{tpu_custom_call.1} parent=1 // pred_check
      _
    $region11: #{tpu_custom_call.1} parent=1 // pred_check_branch
      %38 = sbr.rel (0) target = $region13
    $region12: #{tpu_custom_call.1} parent=1 // pred_region
      _
    $region13: #{tpu_custom_call.1} parent=1 // pred_fallthru
      _
    // Predicated region
    $region14: #{tpu_custom_call.1} parent=1 // pred_check
      _
    $region15: #{tpu_custom_call.1} parent=1 // pred_check_branch
      %40 = sbr.rel (0) target = $region17
    $region16: #{tpu_custom_call.1} parent=1 // pred_region
      %42 = dma.done [#allocation4], 128
    $region17: #{tpu_custom_call.1} parent=1 // pred_fallthru
      _
    // Predicated region
    $region18: #{tpu_custom_call.1} parent=1 // pred_check
      _
    $region19: #{tpu_custom_call.1} parent=1 // pred_check_branch
      %44 = sbr.rel (0) target = $region21
    $region20: #{tpu_custom_call.1} parent=1 // pred_region
      %46 = dma.done [#allocation7], 512
    $region21: #{tpu_custom_call.1} parent=1 // pred_fallthru
      _
    %p48 = scmp.eq.s32.totalorder 0, 0
    // Predicated region
    $region22: #{tpu_custom_call.1} parent=1 // pred_check
      %p49 = pneg %p48
    $region23: #{tpu_custom_call.1} parent=1 // pred_check_branch
      %51 = sbr.rel (%p49) target = $region25
    $region24: #{tpu_custom_call.1} parent=1 // pred_region
      %vm52 = vcmask 523264
      %53 = vst.msk [vmem:[#allocation2] sm:$0xff] %vm52, 0.0
      %54 = vst.msk [vmem:[#allocation2 + $0x8] sm:$0xff] %vm52, 0.0
    $region25: #{tpu_custom_call.1} parent=1 // pred_fallthru
      _
    %v55 = vld [vmem:[#allocation2] sm:$0xff]
    %v56 = vld [vmem:[#allocation2 + $0x8] sm:$0xff]
    %v57 = vld [vmem:[#allocation3] sm:$0xf]
    %v58 = vld [vmem:[#allocation3 + $0x4] sm:$0xf]
    %v59 = vld [vmem:[#allocation6] sm:$0xf]
    %v60 = vld [vmem:[#allocation6 + $0x4] sm:$0xf]
    %v61 = vld [vmem:[#allocation6 + $0x8] sm:$0xf]
    %v62 = vld [vmem:[#allocation6 + $0xc] sm:$0xf]
    %v63 = vld [vmem:[#allocation6 + $0x10] sm:$0xf]
    %v64 = vld [vmem:[#allocation6 + $0x14] sm:$0xf]
    %v65 = vld [vmem:[#allocation6 + $0x18] sm:$0xf]
    %v66 = vld [vmem:[#allocation6 + $0x1c] sm:$0xf]
    %v69 = vunpack.c.l.b16 %v57
    %v70 = vunpack.c.l.b16 %v58
    %v71 = vpack.c.b16 %v70, %v69
    %v80 = vunpack.c.l.b16 %v59
    %v81 = vunpack.c.l.b16 %v60
    %v82 = vunpack.c.l.b16 %v61
    %v83 = vunpack.c.l.b16 %v62
    %v84 = vunpack.c.l.b16 %v63
    %v85 = vunpack.c.l.b16 %v64
    %v86 = vunpack.c.l.b16 %v65
    %v87 = vunpack.c.l.b16 %v66
    %v88 = vpack.c.b16 %v81, %v80
    %v89 = vpack.c.b16 %v83, %v82
    %v90 = vpack.c.b16 %v85, %v84
    %v91 = vpack.c.b16 %v87, %v86
    %vm96 = vcmask 523264
    %v98 = vsel %vm96, %v71, 0
    %100 = vmatpush.bf16.msra.mxu0 0
    %101 = vmatpush.bf16.msra.mxu0 0
    %102 = vmatpush.bf16.msra.mxu0 0
    %103 = vmatpush.bf16.msra.mxu0 0
    %104 = vmatpush.bf16.msra.mxu0 %v91
    %105 = vmatpush.bf16.msra.mxu0 %v90
    %106 = vmatpush.bf16.msra.mxu0 %v89
    %107 = vmatpush.bf16.msra.mxu0 %v88
    %108 = vmatmul.bf16.gmra.mxu0 %v98
    %v109 = vpop.f32.mrf.mxu0
    %v110 = vadd.f32 0.0, %v109
    %v111 = vpop.f32.mrf.mxu0
    %v112 = vadd.f32 0.0, %v111
    %113 = vdwg.mxu0
    %v114 = vadd.f32 %v55, %v110
    %v115 = vadd.f32 %v56, %v112
    %116 = vst.msk [vmem:[#allocation2] sm:$0xff] %vm96, %v114
    %117 = vst.msk [vmem:[#allocation2 + $0x8] sm:$0xff] %vm96, %v115
    // Predicated region
    $region26: #{tpu_custom_call.1} parent=1 // pred_check
      %p118 = pneg %p48
    $region27: #{tpu_custom_call.1} parent=1 // pred_check_branch
      %120 = sbr.rel (%p118) target = $region29
    $region28: #{tpu_custom_call.1} parent=1 // pred_region
      %v121 = vld [vmem:[#allocation2] sm:$0xff]
      %v122 = vld [vmem:[#allocation2 + $0x8] sm:$0xff]
      %v123 = vld [vmem:[%s2] sm:$0x1]
      %v125 = vperm.slane %v123, 0
      %v127 = vadd.f32 %v121, %v125
      %v128 = vadd.f32 %v122, %v125
      %129 = vst.msk [vmem:[#allocation8] sm:$0xff] %vm96, %v127
      %130 = vst.msk [vmem:[#allocation8 + $0x8] sm:$0xff] %vm96, %v128
    $region29: #{tpu_custom_call.1} parent=1 // pred_fallthru
      _
    // Predicated region
    $region30: #{tpu_custom_call.1} parent=1 // pred_check
      _
    $region31: #{tpu_custom_call.1} parent=1 // pred_check_branch
      %132 = sbr.rel (0) target = $region33
    $region32: #{tpu_custom_call.1} parent=1 // pred_region
      %134 = vsyncadd [#allocation5], 0
      %s135 = sshll.u32 [#allocation8], 4
      %s136 = int_to_ptr.vmem [resolvable:$true] %s135
      %s137 = sshll.u32 %s3, 4
      %s138 = int_to_ptr.hbm [resolvable:$true] %s137
      %143 = dma.vmem_to_hbm [thread:$0]  %s136, 256, %s138, [#allocation5], 128, 128, 8
    $region33: #{tpu_custom_call.1} parent=1 // pred_fallthru
      _
    // Predicated region
    $region34: #{tpu_custom_call.1} parent=1 // pred_check
      _
    $region35: #{tpu_custom_call.1} parent=1 // pred_check_branch
      %145 = sbr.rel (0) target = $region37
    $region36: #{tpu_custom_call.1} parent=1 // pred_region
      %147 = dma.done [#allocation5], 256
    $region37: #{tpu_custom_call.1} parent=1 // pred_fallthru
      _
    %148 = vsyncpa [#allocation4], 1
    %149 = vsyncpa [#allocation7], 1
    %150 = vsyncpa [#allocation5], 1

</llo_original>
